<compile_context>
chip_gen: v5e
topology: v5e:2x2
jax: 0.10.0
libtpu: 0.0.40
codegen_flags: <defaults>
</compile_context>

<pallas_src>
import functools

import jax
import jax.numpy as jnp
from jax.experimental import pallas as pl
from jax.experimental.pallas import tpu as pltpu

KT = 5     # temporal kernel size
PAD = 2    # temporal padding
_SUBLANE = 8
_LANE = 128

# measured relative HBM efficiency vs lane-tile width (mem-bound, v6e)
_TILE_EFF = {128: 0.29, 256: 0.63, 512: 0.85, 1024: 0.86, 2048: 0.86}


def _round_up(x, m):
    return (x + m - 1) // m * m


def _lateral_kernel(x_ref, w_ref, b_ref, o_ref, *, alpha, tb, c_pad):
    """One grid step: tb output frames for one (batch, spatial tile).

    x_ref: (1, T_hbm*C_pad, S_tile)   whole padded time axis (collapsed T,C)
    w_ref: (C2_pad, KT*C_pad)         5 taps fused on the contraction dim
    b_ref: (C2_pad, 1)                f32 bias
    o_ref: (1, tb, C2_pad, S_tile)    tb output frames (lane-dense stores)
    """
    t_blk = pl.program_id(2)
    c2, s_tile = o_ref.shape[2], o_ref.shape[3]

    w = w_ref[...]                                          # hoisted: load once
    bias = jnp.broadcast_to(b_ref[...], (c2, s_tile))       # hoisted f32 broadcast

    for i in range(tb):   # static unroll; each result is stored immediately
        t0 = (t_blk * tb + i) * alpha                       # padded-time start
        row0 = pl.multiple_of(t0 * c_pad, c_pad)            # aligned row offset
        xw = x_ref[0, pl.ds(row0, KT * c_pad), :]           # (KT*C_pad, S_tile)
        acc = jnp.dot(w, xw, preferred_element_type=jnp.float32)   # (C2_pad, S_tile)
        o_ref[0, i, :, :] = (acc + bias).astype(o_ref.dtype)


def lateral_block_pallas(x_ncthw, weight, bias, alpha, *,
                         compute_dtype=None, s_tile=None, tb=None,
                         out_layout="NCTHW"):
    """x_ncthw: (N, C, T, H, W); weight: (2C, C, 5, 1, 1); bias: (2C,)."""
    N, C, T, H, W = x_ncthw.shape
    C2 = weight.shape[0]
    S = H * W
    T_out = (T + 2 * PAD - KT) // alpha + 1

    out_dtype = x_ncthw.dtype
    cdt = jnp.dtype(compute_dtype) if compute_dtype is not None else jnp.dtype(out_dtype)

    # channel pads rounded to the compute dtype's sublane pack (8/16/32)
    pack = max(_SUBLANE, (4 * _SUBLANE) // cdt.itemsize)
    C_pad = _round_up(C, pack)
    C2_pad = _round_up(C2, pack)

    # ---- time blocking: minimize T_out padding, at most 8 frames / step ----
    if tb is None:
        tb = min(range(1, min(8, T_out) + 1),
                 key=lambda c: (_round_up(T_out, c), -c))
    T_out_pad = _round_up(T_out, tb)
    T_hbm = max(T + 2 * PAD, (T_out_pad - 1) * alpha + KT)

    # ---- spatial tile + VMEM plan (generation aware) -----------------------
    try:
        vmem_cap = int(pltpu.get_tpu_info().vmem_capacity_bytes)
    except Exception:
        vmem_cap = 64 * 1024 * 1024          # conservative fallback: v7x per-core
    budget = int(0.70 * vmem_cap)

    def vmem_need(st, x_bufs):
        x_blk = T_hbm * C_pad * st * cdt.itemsize
        o_blk = tb * C2_pad * st * jnp.dtype(out_dtype).itemsize
        w_sz = C2_pad * KT * C_pad * cdt.itemsize
        tmp = 2 * C2_pad * st * 4            # f32 acc + hoisted bias broadcast
        return x_bufs * x_blk + 2 * o_blk + 2 * w_sz + tmp + (1 << 20)

    if s_tile is None:
        # pick the lane tile minimizing padded-bytes / measured-efficiency
        cands = sorted(_TILE_EFF, key=lambda t: _round_up(S, t) / _TILE_EFF[t])
    else:
        assert s_tile % _LANE == 0, "s_tile must be a multiple of 128"
        cands = [s_tile]

    plan = None
    for st in cands:
        # prefer double-buffered x; drop to 1 buffer first (x is revisited
        # across the whole inner T loop, so the 2nd buffer only buys overlap
        # at (n, spatial-tile) boundaries), only then shrink s_tile.
        for x_bufs in (2, 1):
            if vmem_need(st, x_bufs) <= budget:
                plan = (st, x_bufs)
                break
        if plan is not None:
            break
    if plan is None:
        plan = (cands[-1] if s_tile is not None else _LANE, 1)
    s_tile, x_bufs = plan
    S_pad = _round_up(S, s_tile)

    need = vmem_need(s_tile, x_bufs)
    vmem_limit = min(max(need + (4 << 20), 32 << 20), int(0.9 * vmem_cap))
    vmem_limit = int(max(vmem_limit, need + (2 << 20)))

    # ---- wrapper-side layout prep (single fused XLA copy pass over x) ------
    # TODO(synk): fold this prep / the post-transpose into producer & consumer;
    # each is one extra HBM pass on an otherwise HBM-bound kernel.
    x = jnp.transpose(x_ncthw.astype(cdt), (0, 2, 1, 3, 4)).reshape(N, T, C, S)
    x = jnp.pad(x, ((0, 0), (PAD, T_hbm - T - PAD),
                    (0, C_pad - C), (0, S_pad - S)))
    x = x.reshape(N, T_hbm * C_pad, S_pad)   # collapse (T, C): tap window is a
                                             # contiguous, C_pad-aligned row slab

    # fused-tap weight: W_fused[o, k*C_pad + c] = weight[o, c, k]
    w = jnp.transpose(weight[:, :, :, 0, 0], (0, 2, 1))        # (2C, KT, C)
    w = jnp.pad(w, ((0, C2_pad - C2), (0, 0), (0, C_pad - C)))
    w = w.reshape(C2_pad, KT * C_pad).astype(cdt)
    b = jnp.pad(bias, (0, C2_pad - C2)).reshape(C2_pad, 1).astype(jnp.float32)

    grid = (N, S_pad // s_tile, T_out_pad // tb)

    x_spec_kw = {} if x_bufs == 2 else {"pipeline_mode": pl.Buffered(1)}
    in_specs = [
        # whole padded time axis; constant in t (innermost) => DMA'd once per
        # (n, spatial tile) and reused across the entire T loop.
        pl.BlockSpec((1, T_hbm * C_pad, s_tile),
                     lambda n, s, t: (n, 0, s), **x_spec_kw),
        pl.BlockSpec((C2_pad, KT * C_pad), lambda n, s, t: (0, 0)),
        pl.BlockSpec((C2_pad, 1), lambda n, s, t: (0, 0)),
    ]
    out_spec = pl.BlockSpec((1, tb, C2_pad, s_tile), lambda n, s, t: (n, t, 0, s))

    cost = pl.CostEstimate(
        flops=int(2 * N * T_out * C2 * KT * C * S),
        transcendentals=0,
        bytes_accessed=int(N * C * T * S * cdt.itemsize
                           + C2 * C * KT * cdt.itemsize
                           + N * T_out * C2 * S * jnp.dtype(out_dtype).itemsize))

    kernel = functools.partial(_lateral_kernel, alpha=alpha, tb=tb, c_pad=C_pad)
    out = pl.pallas_call(
        kernel,
        out_shape=jax.ShapeDtypeStruct((N, T_out_pad, C2_pad, S_pad), out_dtype),
        grid=grid,
        in_specs=in_specs,
        out_specs=out_spec,
        compiler_params=pltpu.CompilerParams(
            # no accumulator, distinct output block per t => all axes parallel
            # (lets v7x's 2nd TensorCore shard T when N*S_blocks is small).
            dimension_semantics=("parallel", "parallel", "parallel"),
            vmem_limit_bytes=vmem_limit),
        cost_estimate=cost,
    )(x, w, b)

    out = out[:, :T_out, :C2, :S].reshape(N, T_out, C2, H, W)
    if out_layout == "NTCS":
        return out                                  # fusion-friendly for concat
    return jnp.transpose(out, (0, 2, 1, 3, 4))      # PyTorch NCTHW convention


def init_lateral_params(key, conv_dim):
    """Synthetic init matching nn.Conv3d(C, 2C, (5,1,1)) with kaiming_normal_
    weight and zero bias."""
    C, C2 = conv_dim, conv_dim * 2
    fan_in = C * KT * 1 * 1
    std = (2.0 / fan_in) ** 0.5
    weight = std * jax.random.normal(key, (C2, C, KT, 1, 1), dtype=jnp.float32)
    bias = jnp.zeros((C2,), dtype=jnp.float32)
    return weight, bias


if __name__ == "__main__":
    conv_dim = 8
    alpha = 2
    N, T, H, W = 2, 8, 4, 4

    key = jax.random.PRNGKey(0)
    kx, kw = jax.random.split(key)
    x = jax.random.normal(kx, (N, conv_dim, T, H, W), dtype=jnp.float32)
    weight, bias = init_lateral_params(kw, conv_dim)

    # f32 path (module-faithful numerics)
    out = jax.block_until_ready(lateral_block_pallas(x, weight, bias, alpha))

    # reference with XLA's conv to validate semantics
    ref = jax.lax.conv_general_dilated(
        x, weight, window_strides=(alpha, 1, 1),
        padding=((PAD, PAD), (0, 0), (0, 0)),
        dimension_numbers=("NCDHW", "OIDHW", "NCDHW"))
    ref = ref + bias.reshape(1, -1, 1, 1, 1)

    assert out.shape == ref.shape, (out.shape, ref.shape)
    assert jnp.allclose(out, ref, atol=1e-4, rtol=1e-4)

    # bf16 fast path (halved HBM traffic / x VMEM; f32 accumulation)
    out_bf16 = jax.block_until_ready(
        lateral_block_pallas(x, weight, bias, alpha, compute_dtype=jnp.bfloat16))
    assert out_bf16.shape == ref.shape
    assert jnp.allclose(out_bf16, ref, atol=1e-1, rtol=1e-1)

    print("KERNEL_OK")
</pallas_src>

<mosaic_0001>
module attributes {stable_mosaic.version = 11 : i64} {
  func.func @_lateral_kernel(%arg0: i32, %arg1: i32, %arg2: i32, %arg3: memref<1x96x256xf32, #tpu.memory_space<vmem>>, %arg4: memref<16x40xf32, #tpu.memory_space<vmem>>, %arg5: memref<16x1xf32, #tpu.memory_space<vmem>>, %arg6: memref<1x4x16x256xf32, #tpu.memory_space<vmem>>) attributes {dimension_semantics = [#tpu.dimension_semantics<parallel>, #tpu.dimension_semantics<parallel>, #tpu.dimension_semantics<parallel>], iteration_bounds = array<i64: 2, 1, 1>, scalar_prefetch = 0 : i64, scratch_operands = 0 : i64, tpu.core_type = #tpu.core_type<tc>, window_params = [{transform_indices = @transform_0, window_bounds = array<i64: 1, 96, 256>}, {pipeline_mode = #tpu.pipeline_mode<synchronous>, transform_indices = @transform_1, window_bounds = array<i64: 16, 40>}, {pipeline_mode = #tpu.pipeline_mode<synchronous>, transform_indices = @transform_2, window_bounds = array<i64: 16, 1>}, {transform_indices = @transform_3, window_bounds = array<i64: 1, 4, 16, 256>}]} {
    %c0 = arith.constant 0 : index
    %c0_0 = arith.constant 0 : index
    %0 = vector.load %arg4[%c0, %c0_0] : memref<16x40xf32, #tpu.memory_space<vmem>>, vector<16x40xf32>
    %c0_1 = arith.constant 0 : index
    %c0_2 = arith.constant 0 : index
    %1 = vector.load %arg5[%c0_1, %c0_2] : memref<16x1xf32, #tpu.memory_space<vmem>>, vector<16x1xf32>
    %2 = vector.shape_cast %1 : vector<16x1xf32> to vector<16x1xf32>
    %3 = vector.broadcast %2 : vector<16x1xf32> to vector<16x256xf32>
    %c4_i32 = arith.constant 4 : i32
    %4 = arith.muli %arg2, %c4_i32 : i32
    %c0_i32 = arith.constant 0 : i32
    %5 = arith.addi %4, %c0_i32 : i32
    %c2_i32 = arith.constant 2 : i32
    %6 = arith.muli %5, %c2_i32 : i32
    %c8_i32 = arith.constant 8 : i32
    %7 = arith.muli %6, %c8_i32 : i32
    %8 = tpu.assume_multiple %7, 8 : i32
    %c0_3 = arith.constant 0 : index
    %9 = arith.index_cast %8 : i32 to index
    %c0_4 = arith.constant 0 : index
    %10 = vector.load %arg3[%c0_3, %9, %c0_4] : memref<1x96x256xf32, #tpu.memory_space<vmem>>, vector<1x40x256xf32>
    %11 = vector.shape_cast %10 : vector<1x40x256xf32> to vector<40x256xf32>
    %cst = arith.constant dense<0.000000e+00> : vector<16x256xf32>
    %12 = tpu.matmul %0, %11, %cst {dimension_numbers = #tpu.dot_dimension_numbers<[1], [0], [0], [1], [0, 0, 1, 1], [], []>} : vector<16x40xf32>, vector<40x256xf32>, vector<16x256xf32> -> vector<16x256xf32>
    %13 = arith.addf %12, %3 : vector<16x256xf32>
    %c0_5 = arith.constant 0 : index
    %c0_6 = arith.constant 0 : index
    %c0_7 = arith.constant 0 : index
    %c0_8 = arith.constant 0 : index
    %14 = vector.load %arg6[%c0_5, %c0_6, %c0_7, %c0_8] : memref<1x4x16x256xf32, #tpu.memory_space<vmem>>, vector<1x1x16x256xf32>
    %15 = vector.shape_cast %14 : vector<1x1x16x256xf32> to vector<16x256xf32>
    %16 = vector.shape_cast %13 : vector<16x256xf32> to vector<1x1x16x256xf32>
    tpu.vector_store %arg6[%c0_5, %c0_6, %c0_7, %c0_8], %16 {strides = array<i32>} : memref<1x4x16x256xf32, #tpu.memory_space<vmem>>, vector<1x1x16x256xf32>,
    %c4_i32_9 = arith.constant 4 : i32
    %17 = arith.muli %arg2, %c4_i32_9 : i32
    %c1_i32 = arith.constant 1 : i32
    %18 = arith.addi %17, %c1_i32 : i32
    %c2_i32_10 = arith.constant 2 : i32
    %19 = arith.muli %18, %c2_i32_10 : i32
    %c8_i32_11 = arith.constant 8 : i32
    %20 = arith.muli %19, %c8_i32_11 : i32
    %21 = tpu.assume_multiple %20, 8 : i32
    %c0_12 = arith.constant 0 : index
    %22 = arith.index_cast %21 : i32 to index
    %c0_13 = arith.constant 0 : index
    %23 = vector.load %arg3[%c0_12, %22, %c0_13] : memref<1x96x256xf32, #tpu.memory_space<vmem>>, vector<1x40x256xf32>
    %24 = vector.shape_cast %23 : vector<1x40x256xf32> to vector<40x256xf32>
    %cst_14 = arith.constant dense<0.000000e+00> : vector<16x256xf32>
    %25 = tpu.matmul %0, %24, %cst_14 {dimension_numbers = #tpu.dot_dimension_numbers<[1], [0], [0], [1], [0, 0, 1, 1], [], []>} : vector<16x40xf32>, vector<40x256xf32>, vector<16x256xf32> -> vector<16x256xf32>
    %26 = arith.addf %25, %3 : vector<16x256xf32>
    %c0_15 = arith.constant 0 : index
    %c1 = arith.constant 1 : index
    %c0_16 = arith.constant 0 : index
    %c0_17 = arith.constant 0 : index
    %27 = vector.load %arg6[%c0_15, %c1, %c0_16, %c0_17] : memref<1x4x16x256xf32, #tpu.memory_space<vmem>>, vector<1x1x16x256xf32>
    %28 = vector.shape_cast %27 : vector<1x1x16x256xf32> to vector<16x256xf32>
    %29 = vector.shape_cast %26 : vector<16x256xf32> to vector<1x1x16x256xf32>
    tpu.vector_store %arg6[%c0_15, %c1, %c0_16, %c0_17], %29 {strides = array<i32>} : memref<1x4x16x256xf32, #tpu.memory_space<vmem>>, vector<1x1x16x256xf32>,
    %c4_i32_18 = arith.constant 4 : i32
    %30 = arith.muli %arg2, %c4_i32_18 : i32
    %c2_i32_19 = arith.constant 2 : i32
    %31 = arith.addi %30, %c2_i32_19 : i32
    %c2_i32_20 = arith.constant 2 : i32
    %32 = arith.muli %31, %c2_i32_20 : i32
    %c8_i32_21 = arith.constant 8 : i32
    %33 = arith.muli %32, %c8_i32_21 : i32
    %34 = tpu.assume_multiple %33, 8 : i32
    %c0_22 = arith.constant 0 : index
    %35 = arith.index_cast %34 : i32 to index
    %c0_23 = arith.constant 0 : index
    %36 = vector.load %arg3[%c0_22, %35, %c0_23] : memref<1x96x256xf32, #tpu.memory_space<vmem>>, vector<1x40x256xf32>
    %37 = vector.shape_cast %36 : vector<1x40x256xf32> to vector<40x256xf32>
    %cst_24 = arith.constant dense<0.000000e+00> : vector<16x256xf32>
    %38 = tpu.matmul %0, %37, %cst_24 {dimension_numbers = #tpu.dot_dimension_numbers<[1], [0], [0], [1], [0, 0, 1, 1], [], []>} : vector<16x40xf32>, vector<40x256xf32>, vector<16x256xf32> -> vector<16x256xf32>
    %39 = arith.addf %38, %3 : vector<16x256xf32>
    %c0_25 = arith.constant 0 : index
    %c2 = arith.constant 2 : index
    %c0_26 = arith.constant 0 : index
    %c0_27 = arith.constant 0 : index
    %40 = vector.load %arg6[%c0_25, %c2, %c0_26, %c0_27] : memref<1x4x16x256xf32, #tpu.memory_space<vmem>>, vector<1x1x16x256xf32>
    %41 = vector.shape_cast %40 : vector<1x1x16x256xf32> to vector<16x256xf32>
    %42 = vector.shape_cast %39 : vector<16x256xf32> to vector<1x1x16x256xf32>
    tpu.vector_store %arg6[%c0_25, %c2, %c0_26, %c0_27], %42 {strides = array<i32>} : memref<1x4x16x256xf32, #tpu.memory_space<vmem>>, vector<1x1x16x256xf32>,
    %c4_i32_28 = arith.constant 4 : i32
    %43 = arith.muli %arg2, %c4_i32_28 : i32
    %c3_i32 = arith.constant 3 : i32
    %44 = arith.addi %43, %c3_i32 : i32
    %c2_i32_29 = arith.constant 2 : i32
    %45 = arith.muli %44, %c2_i32_29 : i32
    %c8_i32_30 = arith.constant 8 : i32
    %46 = arith.muli %45, %c8_i32_30 : i32
    %47 = tpu.assume_multiple %46, 8 : i32
    %c0_31 = arith.constant 0 : index
    %48 = arith.index_cast %47 : i32 to index
    %c0_32 = arith.constant 0 : index
    %49 = vector.load %arg3[%c0_31, %48, %c0_32] : memref<1x96x256xf32, #tpu.memory_space<vmem>>, vector<1x40x256xf32>
    %50 = vector.shape_cast %49 : vector<1x40x256xf32> to vector<40x256xf32>
    %cst_33 = arith.constant dense<0.000000e+00> : vector<16x256xf32>
    %51 = tpu.matmul %0, %50, %cst_33 {dimension_numbers = #tpu.dot_dimension_numbers<[1], [0], [0], [1], [0, 0, 1, 1], [], []>} : vector<16x40xf32>, vector<40x256xf32>, vector<16x256xf32> -> vector<16x256xf32>
    %52 = arith.addf %51, %3 : vector<16x256xf32>
    %c0_34 = arith.constant 0 : index
    %c3 = arith.constant 3 : index
    %c0_35 = arith.constant 0 : index
    %c0_36 = arith.constant 0 : index
    %53 = vector.load %arg6[%c0_34, %c3, %c0_35, %c0_36] : memref<1x4x16x256xf32, #tpu.memory_space<vmem>>, vector<1x1x16x256xf32>
    %54 = vector.shape_cast %53 : vector<1x1x16x256xf32> to vector<16x256xf32>
    %55 = vector.shape_cast %52 : vector<16x256xf32> to vector<1x1x16x256xf32>
    tpu.vector_store %arg6[%c0_34, %c3, %c0_35, %c0_36], %55 {strides = array<i32>} : memref<1x4x16x256xf32, #tpu.memory_space<vmem>>, vector<1x1x16x256xf32>,
    return
  }
  func.func @transform_0(%arg0: i32, %arg1: i32, %arg2: i32) -> (i32, i32, i32) {
    %c0_i32 = arith.constant 0 : i32
    %c0_i32_0 = arith.constant 0 : i32
    return %arg0, %c0_i32, %arg1 : i32, i32, i32
  }
  func.func @transform_1(%arg0: i32, %arg1: i32, %arg2: i32) -> (i32, i32) {
    %c0_i32 = arith.constant 0 : i32
    %c0_i32_0 = arith.constant 0 : i32
    %c0_i32_1 = arith.constant 0 : i32
    return %c0_i32, %c0_i32_0 : i32, i32
  }
  func.func @transform_2(%arg0: i32, %arg1: i32, %arg2: i32) -> (i32, i32) {
    %c0_i32 = arith.constant 0 : i32
    %c0_i32_0 = arith.constant 0 : i32
    %c0_i32_1 = arith.constant 0 : i32
    return %c0_i32, %c0_i32_0 : i32, i32
  }
  func.func @transform_3(%arg0: i32, %arg1: i32, %arg2: i32) -> (i32, i32, i32, i32) {
    %c0_i32 = arith.constant 0 : i32
    %c0_i32_0 = arith.constant 0 : i32
    return %arg0, %arg2, %c0_i32, %arg1 : i32, i32, i32, i32
  }
}

</mosaic_0001>

<llo_original>
// kernel: tpu_custom_call.1
$region0: #{tpu_custom_call.1}
  #allocation0 [shape = 'u32[]', space=smem, size = 0x4, offset = 0x4, fixed_abs, tag = 'smem constant byte address 0x4 - core index']
  #allocation1 [shape = 'u32[72,128]{1,0:T(1,128)}', space=vmem, size = 0x9000, scoped, tag = 'internal scratch']
  %s0 = inlined_call_operand.hbm [shape: f32[2,96,256], index: 0, kind: input, shape index: {}]
  %s1 = inlined_call_operand.vmem [shape: f32[16,40], index: 1, kind: input, shape index: {}]
  %s2 = inlined_call_operand.vmem [shape: f32[16,1], index: 2, kind: input, shape index: {}]
  %s3 = inlined_call_operand.hbm [shape: f32[2,4,16,256], index: 3, kind: output, shape index: {}]
  %s4 = sld [smem:[#allocation0]]
  $region49: #{tpu_custom_call.1} parent=0
    _
  %s6 = ssub.s32 1, %s4
  %s7 = scalar_select 0, %s6, %s4
  $region1: #{tpu_custom_call.1} parent=0
    #allocation2 [shape = 'u8[196608]{0}', space=vmem, size = 0x30000, scoped, tag = 'input window, operand 0']
    #allocation3 [shape = 's32[2]{0}', space=sflag, size = 0x8, scoped, tag = 'scoped memory for tpu_custom_call.1']
    #allocation4 [shape = 's32[2]{0}', space=sflag, size = 0x8, scoped, tag = 'scoped memory for tpu_custom_call.1']
    #allocation5 [shape = 'u8[131072]{0}', space=vmem, size = 0x20000, scoped, tag = 'output window, operand 0']
    %8 = vsyncpa [#allocation3], 0
    %s9 = scalar_lea.sflag [#allocation3], 1
    %10 = vsyncpa %s9, 0
    %11 = vsyncpa [#allocation4], 0
    %s12 = scalar_lea.sflag [#allocation4], 1
    %13 = vsyncpa %s12, 0
    loop: start=0, step=1, limit=4
    $region2: #{tpu_custom_call.1} parent=1 // loop_pre_header
      _
    $region3: #{tpu_custom_call.1} parent=1 // loop_header
      %s15 = sphi 0, %s19
      %p16 = scmp.ge.s32.totalorder %s15, 4
      %s22 = sphi 0, %s41
      %s23 = sphi 0, %s37
      %s24 = sphi 0, %s33
      %s25 = sphi 0, %s22
      %s26 = sphi 0, %s23
      %s27 = sphi 0, %s24
      %s28 = sphi 0, %s25
      %s29 = sphi 0, %s26
      %s30 = sphi 0, %s27
      %s46 = sphi 0, %s48
      %s49 = sphi 0, %s46
      %s50 = sphi 0, %s49
      %s66 = sphi 0, %s50
      %s70 = sphi 0, %s70
      %s72 = sphi 0, %s70
      %s73 = sphi 0, %s72
      %s87 = sphi 0, %s73
      %s91 = sphi 0, %s91
      %s93 = sphi 0, %s91
      %s94 = sphi 0, %s93
      %s108 = sphi 0, %s94
      %s118 = sphi 0, %s120
      %s121 = sphi 0, %s118
      %s122 = sphi 0, %s121
      %s138 = sphi 0, %s122
    $region4: #{tpu_custom_call.1} parent=1 // loop_header_branch
      %18 = sbr.rel (%p16) target = $region8
    $region5: #{tpu_custom_call.1} parent=1 // loop_body
      %s20 = ssub.s32 %s15, 1
      %s21 = ssub.s32 %s15, 2
      %s31 = sadd.s32 1, %s24
      %p32 = scmp.ge.s32.totalorder %s31, 1
      %s33 = scalar_select %p32, 0, %s31
      %s34 = sadd.s32 1, %s23
      %s35 = scalar_select %p32, %s34, %s23
      %p36 = scmp.ge.s32.totalorder %s35, 1
      %s37 = scalar_select %p36, 0, %s35
      %s38 = sadd.s32 1, %s22
      %s39 = scalar_select %p36, %s38, %s22
      %p40 = scmp.ge.s32.totalorder %s39, 2
      %s41 = scalar_select %p40, 0, %s39
      %s42 = ssub.s32 %s22, %s41
      %s43 = ssub.s32 %s23, %s37
      %s44 = sor.u32 %s42, %s43
      %p45 = scmp.eq.s32.totalorder %s44, 0
      %s47 = sadd.s32 %s46, 1
      %s48 = scalar_select %p45, %s46, %s47
      %p51 = pneg %p45
      %p52 = scmp.eq.s32.totalorder %s15, 1
      %p53 = por %p51, %p52
      %p54 = scmp.ne.s32.totalorder %s46, %s49
      %p55 = scmp.eq.s32.totalorder %s15, 0
      %p56 = por %p54, %p55
      %p57 = scmp.ne.s32.totalorder %s46, %s49
      %p58 = scmp.eq.s32.totalorder %s20, 1
      %p59 = por %p57, %p58
      %p60 = scmp.ne.s32.totalorder %s49, %s50
      %p61 = scmp.eq.s32.totalorder %s20, 0
      %p62 = por %p60, %p61
      %p63 = scmp.ne.s32.totalorder %s49, %s50
      %p64 = scmp.eq.s32.totalorder %s21, 1
      %p65 = por %p63, %p64
      %p67 = scmp.ne.s32.totalorder %s50, %s66
      %p68 = scmp.eq.s32.totalorder %s21, 0
      %p69 = por %p67, %p68
      %s71 = sadd.s32 %s70, 1
      %p74 = scmp.eq.s32.totalorder %s15, 1
      %p75 = scmp.ne.s32.totalorder %s70, %s72
      %p76 = scmp.eq.s32.totalorder %s15, 0
      %p77 = por %p75, %p76
      %p78 = scmp.ne.s32.totalorder %s70, %s72
      %p79 = scmp.eq.s32.totalorder %s20, 1
      %p80 = por %p78, %p79
      %p81 = scmp.ne.s32.totalorder %s72, %s73
      %p82 = scmp.eq.s32.totalorder %s20, 0
      %p83 = por %p81, %p82
      %p84 = scmp.ne.s32.totalorder %s72, %s73
      %p85 = scmp.eq.s32.totalorder %s21, 1
      %p86 = por %p84, %p85
      %p88 = scmp.ne.s32.totalorder %s73, %s87
      %p89 = scmp.eq.s32.totalorder %s21, 0
      %p90 = por %p88, %p89
      %s92 = sadd.s32 %s91, 1
      %p95 = scmp.eq.s32.totalorder %s15, 1
      %p96 = scmp.ne.s32.totalorder %s91, %s93
      %p97 = scmp.eq.s32.totalorder %s15, 0
      %p98 = por %p96, %p97
      %p99 = scmp.ne.s32.totalorder %s91, %s93
      %p100 = scmp.eq.s32.totalorder %s20, 1
      %p101 = por %p99, %p100
      %p102 = scmp.ne.s32.totalorder %s93, %s94
      %p103 = scmp.eq.s32.totalorder %s20, 0
      %p104 = por %p102, %p103
      %p105 = scmp.ne.s32.totalorder %s93, %s94
      %p106 = scmp.eq.s32.totalorder %s21, 1
      %p107 = por %p105, %p106
      %p109 = scmp.ne.s32.totalorder %s94, %s108
      %p110 = scmp.eq.s32.totalorder %s21, 0
      %p111 = por %p109, %p110
      %s112 = ssub.s32 %s22, %s41
      %s113 = ssub.s32 %s24, %s33
      %s114 = sor.u32 %s112, %s113
      %s115 = ssub.s32 %s23, %s37
      %s116 = sor.u32 %s114, %s115
      %p117 = scmp.eq.s32.totalorder %s116, 0
      %s119 = sadd.s32 %s118, 1
      %s120 = scalar_select %p117, %s118, %s119
      %p123 = pneg %p117
      %p124 = scmp.eq.s32.totalorder %s15, 1
      %p125 = por %p123, %p124
      %p126 = scmp.ne.s32.totalorder %s118, %s121
      %p127 = scmp.eq.s32.totalorder %s15, 0
      %p128 = por %p126, %p127
      %p129 = scmp.ne.s32.totalorder %s118, %s121
      %p130 = scmp.eq.s32.totalorder %s20, 1
      %p131 = por %p129, %p130
      %p132 = scmp.ne.s32.totalorder %s121, %s122
      %p133 = scmp.eq.s32.totalorder %s20, 0
      %p134 = por %p132, %p133
      %p135 = scmp.ne.s32.totalorder %s121, %s122
      %p136 = scmp.eq.s32.totalorder %s21, 1
      %p137 = por %p135, %p136
      %p139 = scmp.ne.s32.totalorder %s122, %s138
      %p140 = scmp.eq.s32.totalorder %s21, 0
      %p141 = por %p139, %p140
      %p142 = scmp.le.s32.totalorder 1, %s15
      %p143 = scmp.lt.s32.totalorder %s15, 3
      %p144 = pnand %p142, %p143
      %p145 = pneg %p144
      // Predicated region
      $region9: #{tpu_custom_call.1} parent=5 // pred_check
        _
      $region10: #{tpu_custom_call.1} parent=5 // pred_check_branch
        %147 = sbr.rel (%p144) target = $region12
      $region11: #{tpu_custom_call.1} parent=5 // pred_region
        %s148 = ssub.s32 %s15, 1
        // Predicated region
        $region13: #{tpu_custom_call.1} parent=11 // pred_check
          %p149 = pneg %p83
        $region14: #{tpu_custom_call.1} parent=11 // pred_check_branch
          %151 = sbr.rel (%p149) target = $region16
        $region15: #{tpu_custom_call.1} parent=11 // pred_region
          _
        $region16: #{tpu_custom_call.1} parent=11 // pred_fallthru
          _
        // Predicated region
        $region17: #{tpu_custom_call.1} parent=11 // pred_check
          %p152 = pneg %p104
        $region18: #{tpu_custom_call.1} parent=11 // pred_check_branch
          %154 = sbr.rel (%p152) target = $region20
        $region19: #{tpu_custom_call.1} parent=11 // pred_region
          _
        $region20: #{tpu_custom_call.1} parent=11 // pred_fallthru
          _
      $region12: #{tpu_custom_call.1} parent=5 // pred_fallthru
        _
      %p155 = scmp.lt.s32.totalorder %s15, 2
      // Predicated region
      $region21: #{tpu_custom_call.1} parent=5 // pred_check
        %p156 = pneg %p155
      $region22: #{tpu_custom_call.1} parent=5 // pred_check_branch
        %158 = sbr.rel (%p156) target = $region24
      $region23: #{tpu_custom_call.1} parent=5 // pred_region
        // Predicated region
        $region25: #{tpu_custom_call.1} parent=23 // pred_check
          %p159 = pneg %p56
        $region26: #{tpu_custom_call.1} parent=23 // pred_check_branch
          %161 = sbr.rel (%p159) target = $region28
        $region27: #{tpu_custom_call.1} parent=23 // pred_region
          %s162 = sand.u32 %s46, 1
          %s163 = scalar_lea.sflag [#allocation3], %s162
          %s164 = sand.u32 %s46, 1
          %s165 = smul.addr %s164, 192
          %s166 = scalar_lea.vmem [#allocation2], %s165
          %s167 = smul.u32 2, %s23
          %169 = vsyncadd %s163, 0
          %s170 = smul.addr %s22, 24
          %s171 = sadd.s32 %s167, %s170
          %s172 = smul.addr %s171, 8
          %s173 = scalar_lea.hbm %s0, %s172
          %s174 = sshll.u32 %s173, 4
          %s175 = int_to_ptr.hbm [resolvable:$true] %s174
          %s176 = sshll.u32 %s166, 4
          %s177 = int_to_ptr.vmem [resolvable:$true] %s176
          %182 = dma.hbm_to_vmem [thread:$0]  %s175, 3072, %s177, %s163, 256, 256, 16
        $region28: #{tpu_custom_call.1} parent=23 // pred_fallthru
          _
      $region24: #{tpu_custom_call.1} parent=5 // pred_fallthru
        _
      %p183 = scmp.le.s32.totalorder 1, %s15
      %p184 = scmp.lt.s32.totalorder %s15, 3
      %p185 = pnand %p183, %p184
      %p186 = pneg %p185
      // Predicated region
      $region29: #{tpu_custom_call.1} parent=5 // pred_check
        _
      $region30: #{tpu_custom_call.1} parent=5 // pred_check_branch
        %188 = sbr.rel (%p185) target = $region32
      $region31: #{tpu_custom_call.1} parent=5 // pred_region
        %s189 = ssub.s32 %s15, 1
        %s190 = sand.u32 %s49, 1
        %s191 = scalar_lea.sflag [#allocation3], %s190
        %s192 = sand.u32 %s49, 1
        %s193 = smul.addr %s192, 192
        %s194 = scalar_lea.vmem [#allocation2], %s193
        // Predicated region
        $region33: #{tpu_custom_call.1} parent=31 // pred_check
          %p195 = pneg %p62
        $region34: #{tpu_custom_call.1} parent=31 // pred_check_branch
          %197 = sbr.rel (%p195) target = $region36
        $region35: #{tpu_custom_call.1} parent=31 // pred_region
          %199 = dma.done %s191, 3072
        $region36: #{tpu_custom_call.1} parent=31 // pred_fallthru
          _
        %s200 = sand.u32 %s49, 1
        %s201 = scalar_lea.sflag [#allocation3], %s200
        %s202 = sand.u32 %s49, 1
        %s203 = smul.addr %s202, 192
        %s204 = scalar_lea.vmem [#allocation2], %s203
        %p205 = pneg %p62
        %p206 = pneg %p59
        %p207 = pneg %p83
        %p208 = pneg %p80
        %p209 = pneg %p104
        %p210 = pneg %p101
        %p211 = pneg %p134
        %p212 = pneg %p131
        %s213 = sand.u32 %s121, 1
        %s214 = scalar_lea.sflag [#allocation4], %s213
        %s215 = sand.u32 %s121, 1
        %s216 = smul.addr %s215, 128
        %s217 = scalar_lea.vmem [#allocation5], %s216
        %s218 = smul.u32 2, %s26
        %s219 = smul.u32 4, %s27
        %s220 = smul.u32 2, %s26
        %v221 = vld [vmem:[%s1] sm:$0xff]
        %v222 = vld [vmem:[%s1 + $0x8] sm:$0xff]
        %v223 = vld [vmem:[%s2] sm:$0xff]
        %v224 = vld [vmem:[%s2 + $0x8] sm:$0xff]
        %226 = vset.pattern.permute.xlu0 0
        %227 = vperm.xlu0 %226, %v223
        %v228 = vpop.permute.xlu0 %227
        %231 = vset.pattern.permute.xlu0 0
        %232 = vperm.xlu0 %231, %v224
        %v233 = vpop.permute.xlu0 %232
        %s235 = smul.u32 %s27, 64
        %s236 = sshra.s32 %s235, 3
        %s237 = sand.u32 %s235, 7
        %s238 = smul.u32 %s236, 2
        %s239 = smul.addr %s238, 8
        %s240 = scalar_lea.vmem %s194, %s239 [#allocation2]
        %v241 = vld [vmem:[%s240] sm:$0xff]
        %v242 = vld [vmem:[%s240 + $0x8] sm:$0xff]
        %v243 = vld [vmem:[%s240 + $0x10] sm:$0xff]
        %v244 = vld [vmem:[%s240 + $0x18] sm:$0xff]
        %v245 = vld [vmem:[%s240 + $0x20] sm:$0xff]
        %v246 = vld [vmem:[%s240 + $0x28] sm:$0xff]
        %v247 = vld [vmem:[%s240 + $0x30] sm:$0xff]
        %v248 = vld [vmem:[%s240 + $0x38] sm:$0xff]
        %v249 = vld [vmem:[%s240 + $0x40] sm:$0xff]
        %v250 = vld [vmem:[%s240 + $0x48] sm:$0xff]
        %vm251 = vcmask 326656
        %v253 = vsel %vm251, %v221, 0
        %v256 = vsel %vm251, %v222, 0
        %258 = vmatpush.msra.mxu0 0.0
        %259 = vmatpush.msra.mxu0 0.0
        %260 = vmatpush.msra.mxu0 0.0
        %261 = vmatpush.msra.mxu0 0.0
        %262 = vmatpush.msra.mxu0 0.0
        %263 = vmatpush.msra.mxu0 0.0
        %264 = vmatpush.msra.mxu0 0.0
        %265 = vmatpush.msra.mxu0 0.0
        %266 = vmatpush.msra.mxu0 0.0
        %267 = vmatpush.msra.mxu0 0.0
        %268 = vmatpush.msra.mxu0 0.0
        %269 = vmatpush.msra.mxu0 %v249
        %270 = vmatpush.msra.mxu0 %v247
        %271 = vmatpush.msra.mxu0 %v245
        %272 = vmatpush.msra.mxu0 %v243
        %273 = vmatpush.msra.mxu0 %v241
        %274 = vmatmul.f32.gmra.mxu0 %v253
        %v275 = vpop.f32.mrf.mxu0
        %v276 = vadd.f32 %v228, %v275
        %277 = vmatmul.f32.gmra.mxu0 %v256
        %v278 = vpop.f32.mrf.mxu0
        %v279 = vadd.f32 %v233, %v278
        %280 = vdwg.mxu0
        %281 = vmatpush.msra.mxu0 0.0
        %282 = vmatpush.msra.mxu0 0.0
        %283 = vmatpush.msra.mxu0 0.0
        %284 = vmatpush.msra.mxu0 0.0
        %285 = vmatpush.msra.mxu0 0.0
        %286 = vmatpush.msra.mxu0 0.0
        %287 = vmatpush.msra.mxu0 0.0
        %288 = vmatpush.msra.mxu0 0.0
        %289 = vmatpush.msra.mxu0 0.0
        %290 = vmatpush.msra.mxu0 0.0
        %291 = vmatpush.msra.mxu0 0.0
        %292 = vmatpush.msra.mxu0 %v250
        %293 = vmatpush.msra.mxu0 %v248
        %294 = vmatpush.msra.mxu0 %v246
        %295 = vmatpush.msra.mxu0 %v244
        %296 = vmatpush.msra.mxu0 %v242
        %297 = vmatmul.f32.gmra.mxu0 %v253
        %v298 = vpop.f32.mrf.mxu0
        %v299 = vadd.f32 %v228, %v298
        %300 = vmatmul.f32.gmra.mxu0 %v256
        %v301 = vpop.f32.mrf.mxu0
        %v302 = vadd.f32 %v233, %v301
        %303 = vdwg.mxu0
        %304 = vst [vmem:[%s217] sm:$0xff] %v276
        %305 = vst [vmem:[%s217 + $0x8] sm:$0xff] %v299
        %306 = vst [vmem:[%s217 + $0x10] sm:$0xff] %v279
        %307 = vst [vmem:[%s217 + $0x18] sm:$0xff] %v302
        %s308 = smul.u32 %s27, 4
        %s309 = sadd.s32 %s308, 1
        %s310 = smul.u32 %s309, 16
        %s311 = sshra.s32 %s310, 3
        %s312 = sand.u32 %s310, 7
        %s313 = smul.u32 %s311, 2
        %s314 = smul.addr %s313, 8
        %s315 = scalar_lea.vmem %s194, %s314 [#allocation2]
        %v316 = vld [vmem:[%s315] sm:$0xff]
        %v317 = vld [vmem:[%s315 + $0x8] sm:$0xff]
        %v318 = vld [vmem:[%s315 + $0x10] sm:$0xff]
        %v319 = vld [vmem:[%s315 + $0x18] sm:$0xff]
        %v320 = vld [vmem:[%s315 + $0x20] sm:$0xff]
        %v321 = vld [vmem:[%s315 + $0x28] sm:$0xff]
        %v322 = vld [vmem:[%s315 + $0x30] sm:$0xff]
        %v323 = vld [vmem:[%s315 + $0x38] sm:$0xff]
        %v324 = vld [vmem:[%s315 + $0x40] sm:$0xff]
        %v325 = vld [vmem:[%s315 + $0x48] sm:$0xff]
        %326 = vmatpush.msra.mxu0 0.0
        %327 = vmatpush.msra.mxu0 0.0
        %328 = vmatpush.msra.mxu0 0.0
        %329 = vmatpush.msra.mxu0 0.0
        %330 = vmatpush.msra.mxu0 0.0
        %331 = vmatpush.msra.mxu0 0.0
        %332 = vmatpush.msra.mxu0 0.0
        %333 = vmatpush.msra.mxu0 0.0
        %334 = vmatpush.msra.mxu0 0.0
        %335 = vmatpush.msra.mxu0 0.0
        %336 = vmatpush.msra.mxu0 0.0
        %337 = vmatpush.msra.mxu0 %v324
        %338 = vmatpush.msra.mxu0 %v322
        %339 = vmatpush.msra.mxu0 %v320
        %340 = vmatpush.msra.mxu0 %v318
        %341 = vmatpush.msra.mxu0 %v316
        %342 = vmatmul.f32.gmra.mxu0 %v253
        %v343 = vpop.f32.mrf.mxu0
        %v344 = vadd.f32 %v228, %v343
        %345 = vmatmul.f32.gmra.mxu0 %v256
        %v346 = vpop.f32.mrf.mxu0
        %v347 = vadd.f32 %v233, %v346
        %348 = vdwg.mxu0
        %349 = vmatpush.msra.mxu0 0.0
        %350 = vmatpush.msra.mxu0 0.0
        %351 = vmatpush.msra.mxu0 0.0
        %352 = vmatpush.msra.mxu0 0.0
        %353 = vmatpush.msra.mxu0 0.0
        %354 = vmatpush.msra.mxu0 0.0
        %355 = vmatpush.msra.mxu0 0.0
        %356 = vmatpush.msra.mxu0 0.0
        %357 = vmatpush.msra.mxu0 0.0
        %358 = vmatpush.msra.mxu0 0.0
        %359 = vmatpush.msra.mxu0 0.0
        %360 = vmatpush.msra.mxu0 %v325
        %361 = vmatpush.msra.mxu0 %v323
        %362 = vmatpush.msra.mxu0 %v321
        %363 = vmatpush.msra.mxu0 %v319
        %364 = vmatpush.msra.mxu0 %v317
        %365 = vmatmul.f32.gmra.mxu0 %v253
        %v366 = vpop.f32.mrf.mxu0
        %v367 = vadd.f32 %v228, %v366
        %368 = vmatmul.f32.gmra.mxu0 %v256
        %v369 = vpop.f32.mrf.mxu0
        %v370 = vadd.f32 %v233, %v369
        %371 = vdwg.mxu0
        %s372 = scalar_lea.vmem %s217, 32 [#allocation5]
        %373 = vst [vmem:[%s372] sm:$0xff] %v344
        %374 = vst [vmem:[%s372 + $0x8] sm:$0xff] %v367
        %375 = vst [vmem:[%s372 + $0x10] sm:$0xff] %v347
        %376 = vst [vmem:[%s372 + $0x18] sm:$0xff] %v370
        %s377 = sadd.s32 %s308, 2
        %s378 = smul.u32 %s377, 16
        %s379 = sshra.s32 %s378, 3
        %s380 = sand.u32 %s378, 7
        %s381 = smul.u32 %s379, 2
        %s382 = smul.addr %s381, 8
        %s383 = scalar_lea.vmem %s194, %s382 [#allocation2]
        %v384 = vld [vmem:[%s383] sm:$0xff]
        %v385 = vld [vmem:[%s383 + $0x8] sm:$0xff]
        %v386 = vld [vmem:[%s383 + $0x10] sm:$0xff]
        %v387 = vld [vmem:[%s383 + $0x18] sm:$0xff]
        %v388 = vld [vmem:[%s383 + $0x20] sm:$0xff]
        %v389 = vld [vmem:[%s383 + $0x28] sm:$0xff]
        %v390 = vld [vmem:[%s383 + $0x30] sm:$0xff]
        %v391 = vld [vmem:[%s383 + $0x38] sm:$0xff]
        %v392 = vld [vmem:[%s383 + $0x40] sm:$0xff]
        %v393 = vld [vmem:[%s383 + $0x48] sm:$0xff]
        %394 = vmatpush.msra.mxu0 0.0
        %395 = vmatpush.msra.mxu0 0.0
        %396 = vmatpush.msra.mxu0 0.0
        %397 = vmatpush.msra.mxu0 0.0
        %398 = vmatpush.msra.mxu0 0.0
        %399 = vmatpush.msra.mxu0 0.0
        %400 = vmatpush.msra.mxu0 0.0
        %401 = vmatpush.msra.mxu0 0.0
        %402 = vmatpush.msra.mxu0 0.0
        %403 = vmatpush.msra.mxu0 0.0
        %404 = vmatpush.msra.mxu0 0.0
        %405 = vmatpush.msra.mxu0 %v392
        %406 = vmatpush.msra.mxu0 %v390
        %407 = vmatpush.msra.mxu0 %v388
        %408 = vmatpush.msra.mxu0 %v386
        %409 = vmatpush.msra.mxu0 %v384
        %410 = vmatmul.f32.gmra.mxu0 %v253
        %v411 = vpop.f32.mrf.mxu0
        %v412 = vadd.f32 %v228, %v411
        %413 = vmatmul.f32.gmra.mxu0 %v256
        %v414 = vpop.f32.mrf.mxu0
        %v415 = vadd.f32 %v233, %v414
        %416 = vdwg.mxu0
        %417 = vmatpush.msra.mxu0 0.0
        %418 = vmatpush.msra.mxu0 0.0
        %419 = vmatpush.msra.mxu0 0.0
        %420 = vmatpush.msra.mxu0 0.0
        %421 = vmatpush.msra.mxu0 0.0
        %422 = vmatpush.msra.mxu0 0.0
        %423 = vmatpush.msra.mxu0 0.0
        %424 = vmatpush.msra.mxu0 0.0
        %425 = vmatpush.msra.mxu0 0.0
        %426 = vmatpush.msra.mxu0 0.0
        %427 = vmatpush.msra.mxu0 0.0
        %428 = vmatpush.msra.mxu0 %v393
        %429 = vmatpush.msra.mxu0 %v391
        %430 = vmatpush.msra.mxu0 %v389
        %431 = vmatpush.msra.mxu0 %v387
        %432 = vmatpush.msra.mxu0 %v385
        %433 = vmatmul.f32.gmra.mxu0 %v253
        %v434 = vpop.f32.mrf.mxu0
        %v435 = vadd.f32 %v228, %v434
        %436 = vmatmul.f32.gmra.mxu0 %v256
        %v437 = vpop.f32.mrf.mxu0
        %v438 = vadd.f32 %v233, %v437
        %439 = vdwg.mxu0
        %s440 = scalar_lea.vmem %s217, 64 [#allocation5]
        %441 = vst [vmem:[%s440] sm:$0xff] %v412
        %442 = vst [vmem:[%s440 + $0x8] sm:$0xff] %v435
        %443 = vst [vmem:[%s440 + $0x10] sm:$0xff] %v415
        %444 = vst [vmem:[%s440 + $0x18] sm:$0xff] %v438
        %s445 = sadd.s32 %s308, 3
        %s446 = smul.u32 %s445, 16
        %s447 = sshra.s32 %s446, 3
        %s448 = sand.u32 %s446, 7
        %s449 = smul.u32 %s447, 2
        %s450 = smul.addr %s449, 8
        %s451 = scalar_lea.vmem %s194, %s450 [#allocation2]
        %v452 = vld [vmem:[%s451] sm:$0xff]
        %v453 = vld [vmem:[%s451 + $0x8] sm:$0xff]
        %v454 = vld [vmem:[%s451 + $0x10] sm:$0xff]
        %v455 = vld [vmem:[%s451 + $0x18] sm:$0xff]
        %v456 = vld [vmem:[%s451 + $0x20] sm:$0xff]
        %v457 = vld [vmem:[%s451 + $0x28] sm:$0xff]
        %v458 = vld [vmem:[%s451 + $0x30] sm:$0xff]
        %v459 = vld [vmem:[%s451 + $0x38] sm:$0xff]
        %v460 = vld [vmem:[%s451 + $0x40] sm:$0xff]
        %v461 = vld [vmem:[%s451 + $0x48] sm:$0xff]
        %462 = vmatpush.msra.mxu0 0.0
        %463 = vmatpush.msra.mxu0 0.0
        %464 = vmatpush.msra.mxu0 0.0
        %465 = vmatpush.msra.mxu0 0.0
        %466 = vmatpush.msra.mxu0 0.0
        %467 = vmatpush.msra.mxu0 0.0
        %468 = vmatpush.msra.mxu0 0.0
        %469 = vmatpush.msra.mxu0 0.0
        %470 = vmatpush.msra.mxu0 0.0
        %471 = vmatpush.msra.mxu0 0.0
        %472 = vmatpush.msra.mxu0 0.0
        %473 = vmatpush.msra.mxu0 %v460
        %474 = vmatpush.msra.mxu0 %v458
        %475 = vmatpush.msra.mxu0 %v456
        %476 = vmatpush.msra.mxu0 %v454
        %477 = vmatpush.msra.mxu0 %v452
        %478 = vmatmul.f32.gmra.mxu0 %v253
        %v479 = vpop.f32.mrf.mxu0
        %v480 = vadd.f32 %v228, %v479
        %481 = vmatmul.f32.gmra.mxu0 %v256
        %v482 = vpop.f32.mrf.mxu0
        %v483 = vadd.f32 %v233, %v482
        %484 = vdwg.mxu0
        %485 = vmatpush.msra.mxu0 0.0
        %486 = vmatpush.msra.mxu0 0.0
        %487 = vmatpush.msra.mxu0 0.0
        %488 = vmatpush.msra.mxu0 0.0
        %489 = vmatpush.msra.mxu0 0.0
        %490 = vmatpush.msra.mxu0 0.0
        %491 = vmatpush.msra.mxu0 0.0
        %492 = vmatpush.msra.mxu0 0.0
        %493 = vmatpush.msra.mxu0 0.0
        %494 = vmatpush.msra.mxu0 0.0
        %495 = vmatpush.msra.mxu0 0.0
        %496 = vmatpush.msra.mxu0 %v461
        %497 = vmatpush.msra.mxu0 %v459
        %498 = vmatpush.msra.mxu0 %v457
        %499 = vmatpush.msra.mxu0 %v455
        %500 = vmatpush.msra.mxu0 %v453
        %501 = vmatmul.f32.gmra.mxu0 %v253
        %v502 = vpop.f32.mrf.mxu0
        %v503 = vadd.f32 %v228, %v502
        %504 = vmatmul.f32.gmra.mxu0 %v256
        %v505 = vpop.f32.mrf.mxu0
        %v506 = vadd.f32 %v233, %v505
        %507 = vdwg.mxu0
        %s508 = scalar_lea.vmem %s217, 96 [#allocation5]
        %509 = vst [vmem:[%s508] sm:$0xff] %v480
        %510 = vst [vmem:[%s508 + $0x8] sm:$0xff] %v503
        %511 = vst [vmem:[%s508 + $0x10] sm:$0xff] %v483
        %512 = vst [vmem:[%s508 + $0x18] sm:$0xff] %v506
        %s513 = sand.u32 %s121, 1
        %s514 = scalar_lea.sflag [#allocation4], %s513
        %s515 = sand.u32 %s121, 1
        %s516 = smul.addr %s515, 128
        %s517 = scalar_lea.vmem [#allocation5], %s516
        // Predicated region
        $region37: #{tpu_custom_call.1} parent=31 // pred_check
          %p518 = pneg %p131
        $region38: #{tpu_custom_call.1} parent=31 // pred_check_branch
          %520 = sbr.rel (%p518) target = $region40
        $region39: #{tpu_custom_call.1} parent=31 // pred_region
          %s521 = smul.u32 4, %s27
          %s522 = smul.u32 2, %s26
          %524 = vsyncadd %s514, 0
          %s525 = smul.addr %s521, 4
          %s526 = sadd.s32 %s522, %s525
          %s527 = smul.addr %s25, 16
          %s528 = sadd.s32 %s526, %s527
          %s529 = smul.addr %s528, 8
          %s530 = scalar_lea.hbm %s3, %s529
          %s531 = sshll.u32 %s517, 4
          %s532 = int_to_ptr.vmem [resolvable:$true] %s531
          %s533 = sshll.u32 %s530, 4
          %s534 = int_to_ptr.hbm [resolvable:$true] %s533
          %539 = dma.vmem_to_hbm [thread:$0]  %s532, 2048, %s534, %s514, 256, 256, 16
        $region40: #{tpu_custom_call.1} parent=31 // pred_fallthru
          _
      $region32: #{tpu_custom_call.1} parent=5 // pred_fallthru
        _
      %p540 = scmp.le.s32.totalorder 2, %s15
      // Predicated region
      $region41: #{tpu_custom_call.1} parent=5 // pred_check
        %p541 = pneg %p540
      $region42: #{tpu_custom_call.1} parent=5 // pred_check_branch
        %543 = sbr.rel (%p541) target = $region44
      $region43: #{tpu_custom_call.1} parent=5 // pred_region
        %s544 = ssub.s32 %s15, 2
        // Predicated region
        $region45: #{tpu_custom_call.1} parent=43 // pred_check
          %p545 = pneg %p137
        $region46: #{tpu_custom_call.1} parent=43 // pred_check_branch
          %547 = sbr.rel (%p545) target = $region48
        $region47: #{tpu_custom_call.1} parent=43 // pred_region
          %s548 = sand.u32 %s122, 1
          %s549 = scalar_lea.sflag [#allocation4], %s548
          %s550 = sand.u32 %s122, 1
          %s551 = smul.addr %s550, 128
          %s552 = scalar_lea.vmem [#allocation5], %s551
          %554 = dma.done %s549, 2048
        $region48: #{tpu_custom_call.1} parent=43 // pred_fallthru
          _
      $region44: #{tpu_custom_call.1} parent=5 // pred_fallthru
        _
    $region6: #{tpu_custom_call.1} parent=1 // loop_footer
      %s19 = sadd.s32 1, %s15
    $region7: #{tpu_custom_call.1} parent=1 // loop_footer_branch
      %14 = sbr.rel target = $region3
    $region8: #{tpu_custom_call.1} parent=1 // loop_exit
      _
    %555 = vsyncpa [#allocation3], 1
    %s556 = scalar_lea.sflag [#allocation3], 1
    %557 = vsyncpa %s556, 1
    %558 = vsyncpa [#allocation4], 1
    %s559 = scalar_lea.sflag [#allocation4], 1
    %560 = vsyncpa %s559, 1

</llo_original>
